<compile_context>
chip_gen: v7x
topology: tpu7x:2x2x1
jax: 0.10.0
libtpu: 0.0.40
codegen_flags: <defaults>
</compile_context>

<pallas_src>
import jax
import jax.numpy as jnp
from jax.experimental import pallas as pl
from jax.experimental.pallas import tpu as pltpu


def _round_up(n, m):
    return ((n + m - 1) // m) * m


def qnet_kernel(x_ref, a_ref, w1_ref, b1_ref, w2_ref, b2_ref, w3_ref, b3_ref,
                out_ref):
    # fc1: the (obs, act) concat lives entirely in VMEM (lane concat) and feeds a
    # single K = obs_dim + act_dim MXU matmul (one set of LHS pushes instead of two).
    xa = jnp.concatenate([x_ref[...], a_ref[...]], axis=-1).astype(jnp.bfloat16)
    h1 = jnp.dot(xa, w1_ref[...], preferred_element_type=jnp.float32) + b1_ref[...]
    h1 = jnp.maximum(h1, 0.0)                                       # ReLU (f32, VPU)

    # fc2
    h2 = jnp.dot(h1.astype(jnp.bfloat16), w2_ref[...],
                 preferred_element_type=jnp.float32) + b2_ref[...]
    h2 = jnp.maximum(h2, 0.0)                                       # ReLU (f32, VPU)

    # fc3 (output width 1): VPU multiply + cross-lane reduce instead of an N=1 MXU
    # matmul; the scalar bias is read from SMEM.
    q = jnp.sum(h2 * w3_ref[...], axis=-1, keepdims=True) + b3_ref[0, 0]  # [tb, 1]

    # Narrow store: 4 B/row of HBM writeback (masked vst, negligible vs. the matmuls).
    out_ref[...] = q.astype(out_ref.dtype)


def qnetwork_forward(x, a, params, *, batch_tile=2048):
    """x: [B, obs_dim], a: [B, act_dim] -> q: [B, 1] (float32)."""
    w1, b1, w2, b2, w3, b3 = params
    x = x.astype(jnp.float32)
    a = a.astype(jnp.float32)
    B, obs_dim = x.shape
    act_dim = a.shape[1]
    in_dim = obs_dim + act_dim
    hidden = w2.shape[1]

    # ---- batch tile / grid -------------------------------------------------
    # Big tiles amortize the ~0.35 us per-grid-step pipeline overhead.  The
    # default 2048-row cap keeps the f32 h1/h2 temporaries + double-buffered I/O
    # comfortably inside v7x's 64 MiB VMEM; v5e/v6e (128 MiB) tolerate 8192 via
    # the kwarg.  Tiles are balanced across the grid, and we always use >=2 grid
    # steps when the batch allows so v7x's two TensorCores both get work.
    b_aligned = _round_up(max(B, 8), 8)
    n_tiles = pl.cdiv(b_aligned, batch_tile)
    if n_tiles == 1 and b_aligned >= 16:
        n_tiles = 2
    tb = _round_up(pl.cdiv(b_aligned, n_tiles), 8)
    b_pad = tb * n_tiles

    if b_pad != B:
        x = jnp.pad(x, ((0, b_pad - B), (0, 0)))
        a = jnp.pad(a, ((0, b_pad - B), (0, 0)))

    # ---- VMEM budget for the chosen tile (with headroom) ---------------------
    lanes = lambda d: _round_up(d, 128)
    vmem_bytes = (
        2 * tb * (lanes(obs_dim) + lanes(act_dim) + lanes(1)) * 4     # dbl-buffered x/a/out tiles
        + 2 * (in_dim * lanes(hidden) + hidden * lanes(hidden)) * 2   # resident bf16 weights (x2 bufs)
        + 8 * lanes(hidden) * 4                                       # biases / w3 row
        + 6 * tb * lanes(hidden) * 4                                  # h1/h2/bf16 temporaries headroom
    )
    vmem_limit = int(min(max(vmem_bytes * 3 // 2, 32 << 20), 100 << 20))

    flops = 2 * b_pad * (in_dim * hidden + hidden * hidden + hidden)
    bytes_accessed = (b_pad * (obs_dim + act_dim + 1) * 4
                      + (in_dim + hidden) * hidden * 2 + (3 * hidden + 1) * 4)

    batch_spec = lambda d: pl.BlockSpec((tb, d), lambda i: (i, 0))
    resident = lambda r, c: pl.BlockSpec((r, c), lambda i: (0, 0))

    out_pad = pl.pallas_call(
        qnet_kernel,
        out_shape=jax.ShapeDtypeStruct((b_pad, 1), jnp.float32),
        grid_spec=pltpu.PrefetchScalarGridSpec(
            num_scalar_prefetch=0,
            grid=(n_tiles,),
            in_specs=[
                batch_spec(obs_dim),                                 # x tile
                batch_spec(act_dim),                                 # a tile
                resident(in_dim, hidden),                            # fused W1 (bf16)
                resident(1, hidden),                                 # b1 (f32)
                resident(hidden, hidden),                            # W2 (bf16)
                resident(1, hidden),                                 # b2 (f32)
                resident(1, hidden),                                 # w3 row (f32)
                pl.BlockSpec(memory_space=pltpu.MemorySpace.SMEM),   # b3 scalar
            ],
            out_specs=pl.BlockSpec((tb, 1), lambda i: (i, 0)),
        ),
        compiler_params=pltpu.CompilerParams(
            dimension_semantics=("parallel",),
            vmem_limit_bytes=vmem_limit),
        cost_estimate=pl.CostEstimate(flops=flops, transcendentals=0,
                                      bytes_accessed=bytes_accessed),
    )(x, a, w1, b1, w2, b2, w3, b3)

    return out_pad[:B]


def init_params(key, obs_dim, act_dim, hidden=256):
    """Mirrors nn.Linear default init U(-1/sqrt(fan_in), +1/sqrt(fan_in)).

    Weights are stored pre-transposed [in, out].  fc1's weight stays fused
    [obs+act, hidden] (the kernel concatenates obs/act in VMEM); MXU weights are
    bf16 (f32 accumulation in-kernel); fc3's weight is a f32 [1, hidden] row
    vector and its bias a f32 [1, 1] scalar destined for SMEM.
    """
    in_dim = obs_dim + act_dim
    ks = jax.random.split(key, 6)

    def lin(kw, kb, fan_in, fan_out):
        bound = 1.0 / jnp.sqrt(jnp.float32(fan_in))
        w = jax.random.uniform(kw, (fan_in, fan_out), jnp.float32, -bound, bound)
        b = jax.random.uniform(kb, (1, fan_out), jnp.float32, -bound, bound)
        return w, b

    w1, b1 = lin(ks[0], ks[1], in_dim, hidden)
    w2, b2 = lin(ks[2], ks[3], hidden, hidden)
    w3, b3 = lin(ks[4], ks[5], hidden, 1)

    return (w1.astype(jnp.bfloat16), b1,
            w2.astype(jnp.bfloat16), b2,
            w3.reshape(1, hidden), b3.reshape(1, 1))


def reference_forward(x, a, params):
    """Pure-JAX reference using the same bf16-operand / f32-accumulate scheme."""
    w1, b1, w2, b2, w3, b3 = params
    xa = jnp.concatenate([x, a], axis=-1).astype(jnp.bfloat16)
    h1 = jnp.maximum(jnp.dot(xa, w1, preferred_element_type=jnp.float32) + b1, 0.0)
    h2 = jnp.maximum(jnp.dot(h1.astype(jnp.bfloat16), w2,
                             preferred_element_type=jnp.float32) + b2, 0.0)
    return jnp.sum(h2 * w3, axis=-1, keepdims=True) + b3


if __name__ == "__main__":
    key = jax.random.PRNGKey(0)
    k_param, k_x, k_a, k_x2, k_a2 = jax.random.split(key, 5)

    obs_dim, act_dim, batch = 12, 4, 8
    params = init_params(k_param, obs_dim, act_dim)

    # Small inference-style batch (single grid step).
    x = jax.random.normal(k_x, (batch, obs_dim), jnp.float32)
    a = jax.random.normal(k_a, (batch, act_dim), jnp.float32)
    q = jax.block_until_ready(qnetwork_forward(x, a, params))
    q_ref = reference_forward(x, a, params)
    assert q.shape == (batch, 1)
    assert jnp.allclose(q, q_ref, atol=1e-3, rtol=1e-3), "mismatch vs reference (B=8)"

    # Ragged batch: exercises padding + the >=2-step "parallel" batch grid.
    B2 = 200
    x2 = jax.random.normal(k_x2, (B2, obs_dim), jnp.float32)
    a2 = jax.random.normal(k_a2, (B2, act_dim), jnp.float32)
    q2 = jax.block_until_ready(qnetwork_forward(x2, a2, params))
    q2_ref = reference_forward(x2, a2, params)
    assert q2.shape == (B2, 1)
    assert jnp.allclose(q2, q2_ref, atol=1e-3, rtol=1e-3), "mismatch vs reference (B=200)"

    print("KERNEL_OK")
</pallas_src>

<mosaic_0001>
module attributes {stable_mosaic.version = 11 : i64} {
  func.func @qnet_kernel(%arg0: i32, %arg1: memref<8x12xf32, #tpu.memory_space<vmem>>, %arg2: memref<8x4xf32, #tpu.memory_space<vmem>>, %arg3: memref<16x256xbf16, #tpu.memory_space<vmem>>, %arg4: memref<1x256xf32, #tpu.memory_space<vmem>>, %arg5: memref<256x256xbf16, #tpu.memory_space<vmem>>, %arg6: memref<1x256xf32, #tpu.memory_space<vmem>>, %arg7: memref<1x256xf32, #tpu.memory_space<vmem>>, %arg8: memref<1x1xf32, #tpu.memory_space<smem>>, %arg9: memref<8x1xf32, #tpu.memory_space<vmem>>) attributes {dimension_semantics = [#tpu.dimension_semantics<parallel>], iteration_bounds = array<i64: 1>, scalar_prefetch = 0 : i64, scratch_operands = 0 : i64, tpu.core_type = #tpu.core_type<tc>, window_params = [{transform_indices = @transform_0, window_bounds = array<i64: 8, 12>}, {transform_indices = @transform_1, window_bounds = array<i64: 8, 4>}, {pipeline_mode = #tpu.pipeline_mode<synchronous>, transform_indices = @transform_2, window_bounds = array<i64: 16, 256>}, {pipeline_mode = #tpu.pipeline_mode<synchronous>, transform_indices = @transform_3, window_bounds = array<i64: 1, 256>}, {pipeline_mode = #tpu.pipeline_mode<synchronous>, transform_indices = @transform_4, window_bounds = array<i64: 256, 256>}, {pipeline_mode = #tpu.pipeline_mode<synchronous>, transform_indices = @transform_5, window_bounds = array<i64: 1, 256>}, {pipeline_mode = #tpu.pipeline_mode<synchronous>, transform_indices = @transform_6, window_bounds = array<i64: 1, 256>}, {transform_indices = @transform_7, window_bounds = array<i64: 1, 1>}, {transform_indices = @transform_8, window_bounds = array<i64: 8, 1>}]} {
    %c0 = arith.constant 0 : index
    %c0_0 = arith.constant 0 : index
    %0 = vector.load %arg1[%c0, %c0_0] : memref<8x12xf32, #tpu.memory_space<vmem>>, vector<8x12xf32>
    %c0_1 = arith.constant 0 : index
    %c0_2 = arith.constant 0 : index
    %1 = vector.load %arg2[%c0_1, %c0_2] : memref<8x4xf32, #tpu.memory_space<vmem>>, vector<8x4xf32>
    %2 = tpu.concatenate %0, %1 in 1 : vector<8x12xf32>, vector<8x4xf32> -> vector<8x16xf32>
    %3 = arith.truncf %2 : vector<8x16xf32> to vector<8x16xbf16>
    %c0_3 = arith.constant 0 : index
    %c0_4 = arith.constant 0 : index
    %4 = vector.load %arg3[%c0_3, %c0_4] : memref<16x256xbf16, #tpu.memory_space<vmem>>, vector<16x256xbf16>
    %cst = arith.constant dense<0.000000e+00> : vector<8x256xf32>
    %5 = tpu.matmul %3, %4, %cst {dimension_numbers = #tpu.dot_dimension_numbers<[1], [0], [0], [1], [0, 0, 1, 1], [], []>} : vector<8x16xbf16>, vector<16x256xbf16>, vector<8x256xf32> -> vector<8x256xf32>
    %c0_5 = arith.constant 0 : index
    %c0_6 = arith.constant 0 : index
    %6 = vector.load %arg4[%c0_5, %c0_6] : memref<1x256xf32, #tpu.memory_space<vmem>>, vector<1x256xf32>
    %7 = vector.broadcast %6 : vector<1x256xf32> to vector<8x256xf32>
    %8 = arith.addf %5, %7 : vector<8x256xf32>
    %cst_7 = arith.constant 0.000000e+00 : f32
    %9 = vector.broadcast %cst_7 : f32 to vector<8x256xf32>
    %10 = arith.maximumf %8, %9 : vector<8x256xf32>
    %11 = arith.truncf %10 : vector<8x256xf32> to vector<8x256xbf16>
    %c0_8 = arith.constant 0 : index
    %c0_9 = arith.constant 0 : index
    %12 = vector.load %arg5[%c0_8, %c0_9] : memref<256x256xbf16, #tpu.memory_space<vmem>>, vector<256x256xbf16>
    %cst_10 = arith.constant dense<0.000000e+00> : vector<8x256xf32>
    %13 = tpu.matmul %11, %12, %cst_10 {dimension_numbers = #tpu.dot_dimension_numbers<[1], [0], [0], [1], [0, 0, 1, 1], [], []>} : vector<8x256xbf16>, vector<256x256xbf16>, vector<8x256xf32> -> vector<8x256xf32>
    %c0_11 = arith.constant 0 : index
    %c0_12 = arith.constant 0 : index
    %14 = vector.load %arg6[%c0_11, %c0_12] : memref<1x256xf32, #tpu.memory_space<vmem>>, vector<1x256xf32>
    %15 = vector.broadcast %14 : vector<1x256xf32> to vector<8x256xf32>
    %16 = arith.addf %13, %15 : vector<8x256xf32>
    %cst_13 = arith.constant 0.000000e+00 : f32
    %17 = vector.broadcast %cst_13 : f32 to vector<8x256xf32>
    %18 = arith.maximumf %16, %17 : vector<8x256xf32>
    %c0_14 = arith.constant 0 : index
    %c0_15 = arith.constant 0 : index
    %19 = vector.load %arg7[%c0_14, %c0_15] : memref<1x256xf32, #tpu.memory_space<vmem>>, vector<1x256xf32>
    %20 = vector.broadcast %19 : vector<1x256xf32> to vector<8x256xf32>
    %21 = arith.mulf %18, %20 : vector<8x256xf32>
    %cst_16 = arith.constant dense<0.000000e+00> : vector<8xf32>
    %22 = vector.multi_reduction <add>, %21, %cst_16 [1] : vector<8x256xf32> to vector<8xf32>
    %23 = vector.shape_cast %22 : vector<8xf32> to vector<8x1xf32>
    %c0_17 = arith.constant 0 : index
    %c0_18 = arith.constant 0 : index
    %24 = memref.load %arg8[%c0_17, %c0_18] : memref<1x1xf32, #tpu.memory_space<smem>>
    %25 = vector.broadcast %24 : f32 to vector<8x1xf32>
    %26 = arith.addf %23, %25 : vector<8x1xf32>
    %c0_19 = arith.constant 0 : index
    %c0_20 = arith.constant 0 : index
    %27 = vector.load %arg9[%c0_19, %c0_20] : memref<8x1xf32, #tpu.memory_space<vmem>>, vector<8x1xf32>
    tpu.vector_store %arg9[%c0_19, %c0_20], %26 {strides = array<i32>} : memref<8x1xf32, #tpu.memory_space<vmem>>, vector<8x1xf32>,
    return
  }
  func.func @transform_0(%arg0: i32) -> (i32, i32) {
    %c0_i32 = arith.constant 0 : i32
    %c0_i32_0 = arith.constant 0 : i32
    return %arg0, %c0_i32 : i32, i32
  }
  func.func @transform_1(%arg0: i32) -> (i32, i32) {
    %c0_i32 = arith.constant 0 : i32
    %c0_i32_0 = arith.constant 0 : i32
    return %arg0, %c0_i32 : i32, i32
  }
  func.func @transform_2(%arg0: i32) -> (i32, i32) {
    %c0_i32 = arith.constant 0 : i32
    %c0_i32_0 = arith.constant 0 : i32
    %c0_i32_1 = arith.constant 0 : i32
    return %c0_i32, %c0_i32_0 : i32, i32
  }
  func.func @transform_3(%arg0: i32) -> (i32, i32) {
    %c0_i32 = arith.constant 0 : i32
    %c0_i32_0 = arith.constant 0 : i32
    %c0_i32_1 = arith.constant 0 : i32
    return %c0_i32, %c0_i32_0 : i32, i32
  }
  func.func @transform_4(%arg0: i32) -> (i32, i32) {
    %c0_i32 = arith.constant 0 : i32
    %c0_i32_0 = arith.constant 0 : i32
    %c0_i32_1 = arith.constant 0 : i32
    return %c0_i32, %c0_i32_0 : i32, i32
  }
  func.func @transform_5(%arg0: i32) -> (i32, i32) {
    %c0_i32 = arith.constant 0 : i32
    %c0_i32_0 = arith.constant 0 : i32
    %c0_i32_1 = arith.constant 0 : i32
    return %c0_i32, %c0_i32_0 : i32, i32
  }
  func.func @transform_6(%arg0: i32) -> (i32, i32) {
    %c0_i32 = arith.constant 0 : i32
    %c0_i32_0 = arith.constant 0 : i32
    %c0_i32_1 = arith.constant 0 : i32
    return %c0_i32, %c0_i32_0 : i32, i32
  }
  func.func @transform_7(%arg0: i32) -> (i32, i32) {
    %c0_i32 = arith.constant 0 : i32
    %c0_i32_0 = arith.constant 0 : i32
    %c0_i32_1 = arith.constant 0 : i32
    return %c0_i32, %c0_i32_0 : i32, i32
  }
  func.func @transform_8(%arg0: i32) -> (i32, i32) {
    %c0_i32 = arith.constant 0 : i32
    %c0_i32_0 = arith.constant 0 : i32
    return %arg0, %c0_i32 : i32, i32
  }
}

</mosaic_0001>

<llo_original>
// kernel: tpu_custom_call.1
$region0: #{tpu_custom_call.1}
  #allocation0 [shape = 'u32[]', space=smem, size = 0x4, offset = 0x4, fixed_abs, tag = 'smem constant byte address 0x4 - core index']
  #allocation1 [shape = 'u32[144,128]{1,0:T(1,128)}', space=vmem, size = 0x12000, scoped, tag = 'internal scratch']
  #allocation2 [shape = 'f32[1,1]{1,0:T(1,128)S(6)}', space=smem, size = 0x200, scoped, tag = 'scoped memory for tpu_custom_call.1']
  %s0 = inlined_call_operand.hbm [shape: f32[8,12], index: 0, kind: input, shape index: {}]
  %s1 = inlined_call_operand.vmem [shape: f32[8,4], index: 1, kind: input, shape index: {}]
  %s2 = inlined_call_operand.vmem [shape: bf16[16,256], index: 2, kind: input, shape index: {}]
  %s3 = inlined_call_operand.vmem [shape: f32[1,256], index: 3, kind: input, shape index: {}]
  %s4 = inlined_call_operand.hbm [shape: bf16[256,256], index: 4, kind: input, shape index: {}]
  %s5 = inlined_call_operand.vmem [shape: f32[1,256], index: 5, kind: input, shape index: {}]
  %s6 = inlined_call_operand.vmem [shape: f32[1,256], index: 6, kind: input, shape index: {}]
  %s7 = inlined_call_operand.<no memory space> [shape: f32[1,1], index: 7, kind: input, shape index: {}]
  %s8 = inlined_call_operand.vmem [shape: f32[8,1], index: 8, kind: output, shape index: {}]
  %s9 = sld [smem:[#allocation0]]
  $region50: #{tpu_custom_call.1} parent=0
    _
  %s11 = ssub.s32 1, %s9
  %s12 = scalar_select 0, %s11, %s9
  %13 = sst [smem:[#allocation2]] %s7
  $region1: #{tpu_custom_call.1} parent=0
    #allocation3 [shape = 'u8[4096]{0}', space=vmem, size = 0x1000, scoped, tag = 'input window, operand 0, single buffered']
    #allocation4 [shape = 's32[1]{0}', space=sflag, size = 0x4, scoped, tag = 'scoped memory for tpu_custom_call.1']
    #allocation5 [shape = 'u8[131072]{0}', space=vmem, size = 0x20000, scoped, tag = 'input window, operand 4, single buffered']
    #allocation6 [shape = 's32[1]{0}', space=sflag, size = 0x4, scoped, tag = 'scoped memory for tpu_custom_call.1']
    %14 = vsyncpa [#allocation4], 0
    %15 = vsyncpa [#allocation6], 0
    // Predicated region
    $region2: #{tpu_custom_call.1} parent=1 // pred_check
      _
    $region3: #{tpu_custom_call.1} parent=1 // pred_check_branch
      %17 = sbr.rel (0) target = $region5
    $region4: #{tpu_custom_call.1} parent=1 // pred_region
      %s19 = ssub.s32 128, 128
      %20 = vsyncadd [#allocation4], %s19
      %s22 = sshll.u32 [#allocation3], 4
      %s23 = int_to_ptr.vmem [resolvable:$true] %s22
      %25 = dma.hbm_to_vmem [thread:$0]  %s0, 128, %s23, [#allocation4]
    $region5: #{tpu_custom_call.1} parent=1 // pred_fallthru
      _
    // Predicated region
    $region6: #{tpu_custom_call.1} parent=1 // pred_check
      _
    $region7: #{tpu_custom_call.1} parent=1 // pred_check_branch
      %27 = sbr.rel (0) target = $region9
    $region8: #{tpu_custom_call.1} parent=1 // pred_region
      _
    $region9: #{tpu_custom_call.1} parent=1 // pred_fallthru
      _
    // Predicated region
    $region10: #{tpu_custom_call.1} parent=1 // pred_check
      _
    $region11: #{tpu_custom_call.1} parent=1 // pred_check_branch
      %29 = sbr.rel (0) target = $region13
    $region12: #{tpu_custom_call.1} parent=1 // pred_region
      _
    $region13: #{tpu_custom_call.1} parent=1 // pred_fallthru
      _
    // Predicated region
    $region14: #{tpu_custom_call.1} parent=1 // pred_check
      _
    $region15: #{tpu_custom_call.1} parent=1 // pred_check_branch
      %31 = sbr.rel (0) target = $region17
    $region16: #{tpu_custom_call.1} parent=1 // pred_region
      _
    $region17: #{tpu_custom_call.1} parent=1 // pred_fallthru
      _
    // Predicated region
    $region18: #{tpu_custom_call.1} parent=1 // pred_check
      _
    $region19: #{tpu_custom_call.1} parent=1 // pred_check_branch
      %33 = sbr.rel (0) target = $region21
    $region20: #{tpu_custom_call.1} parent=1 // pred_region
      %s35 = ssub.s32 4096, 4096
      %36 = vsyncadd [#allocation6], %s35
      %s37 = sshll.u32 [#allocation5], 4
      %s38 = int_to_ptr.vmem [resolvable:$true] %s37
      %43 = dma.hbm_to_vmem [thread:$0]  %s4, 4096, %s38, [#allocation6], 128, 128, 8
    $region21: #{tpu_custom_call.1} parent=1 // pred_fallthru
      _
    // Predicated region
    $region22: #{tpu_custom_call.1} parent=1 // pred_check
      _
    $region23: #{tpu_custom_call.1} parent=1 // pred_check_branch
      %45 = sbr.rel (0) target = $region25
    $region24: #{tpu_custom_call.1} parent=1 // pred_region
      _
    $region25: #{tpu_custom_call.1} parent=1 // pred_fallthru
      _
    // Predicated region
    $region26: #{tpu_custom_call.1} parent=1 // pred_check
      _
    $region27: #{tpu_custom_call.1} parent=1 // pred_check_branch
      %47 = sbr.rel (0) target = $region29
    $region28: #{tpu_custom_call.1} parent=1 // pred_region
      _
    $region29: #{tpu_custom_call.1} parent=1 // pred_fallthru
      _
    // Predicated region
    $region30: #{tpu_custom_call.1} parent=1 // pred_check
      _
    $region31: #{tpu_custom_call.1} parent=1 // pred_check_branch
      %49 = sbr.rel (0) target = $region33
    $region32: #{tpu_custom_call.1} parent=1 // pred_region
      _
    $region33: #{tpu_custom_call.1} parent=1 // pred_fallthru
      _
    // Predicated region
    $region34: #{tpu_custom_call.1} parent=1 // pred_check
      _
    $region35: #{tpu_custom_call.1} parent=1 // pred_check_branch
      %51 = sbr.rel (0) target = $region37
    $region36: #{tpu_custom_call.1} parent=1 // pred_region
      %52 = dma.done [#allocation4], 128
    $region37: #{tpu_custom_call.1} parent=1 // pred_fallthru
      _
    // Predicated region
    $region38: #{tpu_custom_call.1} parent=1 // pred_check
      _
    $region39: #{tpu_custom_call.1} parent=1 // pred_check_branch
      %54 = sbr.rel (0) target = $region41
    $region40: #{tpu_custom_call.1} parent=1 // pred_region
      %55 = dma.done [#allocation6], 4096
    $region41: #{tpu_custom_call.1} parent=1 // pred_fallthru
      _
    %v57 = vld [vmem:[#allocation3] sm:$0xff]
    %v58 = vld [vmem:[%s1] sm:$0xff]
    %60 = vrot.lane.b32.xlu0 %v58, 12
    %v61 = vpop.permute.xlu0 %60
    %vm63 = vcmask 97280
    %v64 = vsel %vm63, %v57, %v61
    %v65 = vpack.c.bf16 %v64, %v64
    %v66 = vld [vmem:[%s2] sm:$0xff]
    %v67 = vld [vmem:[%s2 + $0x8] sm:$0xff]
    %v68 = vld [vmem:[%s3] sm:$0x3]
    %v70 = vlaneseq
    %v71 = vshrl.u32 %v70, 7
    %v72 = vsub.s32 0, %v71
    %v73 = vrot.slane %v68, %v72
    %v74 = vlaneseq
    %v75 = vshrl.u32 %v74, 7
    %v76 = vsub.s32 1, %v75
    %v77 = vrot.slane %v68, %v76
    %v82 = vunpack.c.l.b16 %v66
    %v83 = vunpack.c.h.b16 %v66
    %v84 = vunpack.c.l.b16 %v67
    %v85 = vunpack.c.h.b16 %v67
    %v86 = vpack.c.b16 %v84, %v82
    %v87 = vpack.c.b16 %v85, %v83
    %vm90 = vcmask 130048
    %v92 = vsel %vm90, %v65, 0
    %94 = vmatprep.subr.bf16.mxu0 %v87
    %95 = vmatpush1.bf16.msra.mxu0 %v86
    %96 = vmatprep.subr.bf16.mxu0 0
    %97 = vmatpush1.bf16.msra.mxu0 0
    %98 = vmatprep.subr.bf16.mxu0 0
    %99 = vmatpush1.bf16.msra.mxu0 0
    %100 = vmatprep.subr.bf16.mxu0 0
    %101 = vmatpush1.bf16.msra.mxu0 0
    %102 = vmatprep.subr.bf16.mxu0 0
    %103 = vmatpush1.bf16.msra.mxu0 0
    %104 = vmatprep.subr.bf16.mxu0 0
    %105 = vmatpush1.bf16.msra.mxu0 0
    %106 = vmatprep.subr.bf16.mxu0 0
    %107 = vmatpush1.bf16.msra.mxu0 0
    %108 = vmatprep.subr.bf16.mxu0 0
    %109 = vmatpush1.bf16.msra.mxu0 0
    %110 = vmatprep.subr.bf16.mxu0 0
    %111 = vmatpush1.bf16.msra.mxu0 0
    %112 = vmatprep.subr.bf16.mxu0 0
    %113 = vmatpush1.bf16.msra.mxu0 0
    %114 = vmatprep.subr.bf16.mxu0 0
    %115 = vmatpush1.bf16.msra.mxu0 0
    %116 = vmatprep.subr.bf16.mxu0 0
    %117 = vmatpush1.bf16.msra.mxu0 0
    %118 = vmatprep.subr.bf16.mxu0 0
    %119 = vmatpush1.bf16.msra.mxu0 0
    %120 = vmatprep.subr.bf16.mxu0 0
    %121 = vmatpush1.bf16.msra.mxu0 0
    %122 = vmatprep.subr.bf16.mxu0 0
    %123 = vmatpush1.bf16.msra.mxu0 0
    %124 = vmatprep.subr.bf16.mxu0 0
    %125 = vmatpush1.bf16.msra.mxu0 0
    %126 = vmatprep.mubr.bf16.mxu0 0
    %127 = vmatmul.mubr.bf16.gmra.mrb[0].mxu0 %v92
    %v128 = vpop.f32.mrb[0].mxu0
    %v129 = vadd.f32 %v73, %v128
    %v130 = vpop.f32.mrb[0].mxu0
    %v131 = vadd.f32 %v77, %v130
    %v132 = vpop.f32.mrb[0].mxu0
    %v133 = vpop.f32.mrb[0].mxu0
    %134 = vdwg.mxu0
    %v135 = vmax.f32 %v129, 0.0
    %v136 = vmax.f32 %v131, 0.0
    %v137 = vpack.c.bf16 %v135, %v135
    %v138 = vpack.c.bf16 %v136, %v136
    %v139 = vld [vmem:[#allocation5] sm:$0xff]
    %v140 = vld [vmem:[#allocation5 + $0x8] sm:$0xff]
    %v141 = vld [vmem:[#allocation5 + $0x10] sm:$0xff]
    %v142 = vld [vmem:[#allocation5 + $0x18] sm:$0xff]
    %v143 = vld [vmem:[#allocation5 + $0x20] sm:$0xff]
    %v144 = vld [vmem:[#allocation5 + $0x28] sm:$0xff]
    %v145 = vld [vmem:[#allocation5 + $0x30] sm:$0xff]
    %v146 = vld [vmem:[#allocation5 + $0x38] sm:$0xff]
    %v147 = vld [vmem:[#allocation5 + $0x40] sm:$0xff]
    %v148 = vld [vmem:[#allocation5 + $0x48] sm:$0xff]
    %v149 = vld [vmem:[#allocation5 + $0x50] sm:$0xff]
    %v150 = vld [vmem:[#allocation5 + $0x58] sm:$0xff]
    %v151 = vld [vmem:[#allocation5 + $0x60] sm:$0xff]
    %v152 = vld [vmem:[#allocation5 + $0x68] sm:$0xff]
    %v153 = vld [vmem:[#allocation5 + $0x70] sm:$0xff]
    %v154 = vld [vmem:[#allocation5 + $0x78] sm:$0xff]
    %v155 = vld [vmem:[#allocation5 + $0x80] sm:$0xff]
    %v156 = vld [vmem:[#allocation5 + $0x88] sm:$0xff]
    %v157 = vld [vmem:[#allocation5 + $0x90] sm:$0xff]
    %v158 = vld [vmem:[#allocation5 + $0x98] sm:$0xff]
    %v159 = vld [vmem:[#allocation5 + $0xa0] sm:$0xff]
    %v160 = vld [vmem:[#allocation5 + $0xa8] sm:$0xff]
    %v161 = vld [vmem:[#allocation5 + $0xb0] sm:$0xff]
    %v162 = vld [vmem:[#allocation5 + $0xb8] sm:$0xff]
    %v163 = vld [vmem:[#allocation5 + $0xc0] sm:$0xff]
    %v164 = vld [vmem:[#allocation5 + $0xc8] sm:$0xff]
    %v165 = vld [vmem:[#allocation5 + $0xd0] sm:$0xff]
    %v166 = vld [vmem:[#allocation5 + $0xd8] sm:$0xff]
    %v167 = vld [vmem:[#allocation5 + $0xe0] sm:$0xff]
    %v168 = vld [vmem:[#allocation5 + $0xe8] sm:$0xff]
    %v169 = vld [vmem:[#allocation5 + $0xf0] sm:$0xff]
    %v170 = vld [vmem:[#allocation5 + $0xf8] sm:$0xff]
    %v171 = vld [vmem:[%s5] sm:$0x3]
    %v173 = vlaneseq
    %v174 = vshrl.u32 %v173, 7
    %v175 = vsub.s32 0, %v174
    %v176 = vrot.slane %v171, %v175
    %v177 = vlaneseq
    %v178 = vshrl.u32 %v177, 7
    %v179 = vsub.s32 1, %v178
    %v180 = vrot.slane %v171, %v179
    %v215 = vunpack.c.l.b16 %v139
    %v216 = vunpack.c.h.b16 %v139
    %v217 = vunpack.c.l.b16 %v140
    %v218 = vunpack.c.h.b16 %v140
    %v219 = vunpack.c.l.b16 %v141
    %v220 = vunpack.c.h.b16 %v141
    %v221 = vunpack.c.l.b16 %v142
    %v222 = vunpack.c.h.b16 %v142
    %v223 = vunpack.c.l.b16 %v143
    %v224 = vunpack.c.h.b16 %v143
    %v225 = vunpack.c.l.b16 %v144
    %v226 = vunpack.c.h.b16 %v144
    %v227 = vunpack.c.l.b16 %v145
    %v228 = vunpack.c.h.b16 %v145
    %v229 = vunpack.c.l.b16 %v146
    %v230 = vunpack.c.h.b16 %v146
    %v231 = vunpack.c.l.b16 %v147
    %v232 = vunpack.c.h.b16 %v147
    %v233 = vunpack.c.l.b16 %v148
    %v234 = vunpack.c.h.b16 %v148
    %v235 = vunpack.c.l.b16 %v149
    %v236 = vunpack.c.h.b16 %v149
    %v237 = vunpack.c.l.b16 %v150
    %v238 = vunpack.c.h.b16 %v150
    %v239 = vunpack.c.l.b16 %v151
    %v240 = vunpack.c.h.b16 %v151
    %v241 = vunpack.c.l.b16 %v152
    %v242 = vunpack.c.h.b16 %v152
    %v243 = vunpack.c.l.b16 %v153
    %v244 = vunpack.c.h.b16 %v153
    %v245 = vunpack.c.l.b16 %v154
    %v246 = vunpack.c.h.b16 %v154
    %v247 = vunpack.c.l.b16 %v155
    %v248 = vunpack.c.h.b16 %v155
    %v249 = vunpack.c.l.b16 %v156
    %v250 = vunpack.c.h.b16 %v156
    %v251 = vunpack.c.l.b16 %v157
    %v252 = vunpack.c.h.b16 %v157
    %v253 = vunpack.c.l.b16 %v158
    %v254 = vunpack.c.h.b16 %v158
    %v255 = vunpack.c.l.b16 %v159
    %v256 = vunpack.c.h.b16 %v159
    %v257 = vunpack.c.l.b16 %v160
    %v258 = vunpack.c.h.b16 %v160
    %v259 = vunpack.c.l.b16 %v161
    %v260 = vunpack.c.h.b16 %v161
    %v261 = vunpack.c.l.b16 %v162
    %v262 = vunpack.c.h.b16 %v162
    %v263 = vunpack.c.l.b16 %v163
    %v264 = vunpack.c.h.b16 %v163
    %v265 = vunpack.c.l.b16 %v164
    %v266 = vunpack.c.h.b16 %v164
    %v267 = vunpack.c.l.b16 %v165
    %v268 = vunpack.c.h.b16 %v165
    %v269 = vunpack.c.l.b16 %v166
    %v270 = vunpack.c.h.b16 %v166
    %v271 = vunpack.c.l.b16 %v167
    %v272 = vunpack.c.h.b16 %v167
    %v273 = vunpack.c.l.b16 %v168
    %v274 = vunpack.c.h.b16 %v168
    %v275 = vunpack.c.l.b16 %v169
    %v276 = vunpack.c.h.b16 %v169
    %v277 = vunpack.c.l.b16 %v170
    %v278 = vunpack.c.h.b16 %v170
    %v279 = vpack.c.b16 %v217, %v215
    %v280 = vpack.c.b16 %v218, %v216
    %v281 = vpack.c.b16 %v221, %v219
    %v282 = vpack.c.b16 %v222, %v220
    %v283 = vpack.c.b16 %v225, %v223
    %v284 = vpack.c.b16 %v226, %v224
    %v285 = vpack.c.b16 %v229, %v227
    %v286 = vpack.c.b16 %v230, %v228
    %v287 = vpack.c.b16 %v233, %v231
    %v288 = vpack.c.b16 %v234, %v232
    %v289 = vpack.c.b16 %v237, %v235
    %v290 = vpack.c.b16 %v238, %v236
    %v291 = vpack.c.b16 %v241, %v239
    %v292 = vpack.c.b16 %v242, %v240
    %v293 = vpack.c.b16 %v245, %v243
    %v294 = vpack.c.b16 %v246, %v244
    %v295 = vpack.c.b16 %v249, %v247
    %v296 = vpack.c.b16 %v250, %v248
    %v297 = vpack.c.b16 %v253, %v251
    %v298 = vpack.c.b16 %v254, %v252
    %v299 = vpack.c.b16 %v257, %v255
    %v300 = vpack.c.b16 %v258, %v256
    %v301 = vpack.c.b16 %v261, %v259
    %v302 = vpack.c.b16 %v262, %v260
    %v303 = vpack.c.b16 %v265, %v263
    %v304 = vpack.c.b16 %v266, %v264
    %v305 = vpack.c.b16 %v269, %v267
    %v306 = vpack.c.b16 %v270, %v268
    %v307 = vpack.c.b16 %v273, %v271
    %v308 = vpack.c.b16 %v274, %v272
    %v309 = vpack.c.b16 %v277, %v275
    %v310 = vpack.c.b16 %v278, %v276
    %343 = vmatprep.subr.bf16.mxu0 %v280
    %344 = vmatpush1.bf16.msra.mxu0 %v279
    %345 = vmatprep.subr.bf16.mxu0 %v282
    %346 = vmatpush1.bf16.msra.mxu0 %v281
    %347 = vmatprep.subr.bf16.mxu0 %v284
    %348 = vmatpush1.bf16.msra.mxu0 %v283
    %349 = vmatprep.subr.bf16.mxu0 %v286
    %350 = vmatpush1.bf16.msra.mxu0 %v285
    %351 = vmatprep.subr.bf16.mxu0 %v288
    %352 = vmatpush1.bf16.msra.mxu0 %v287
    %353 = vmatprep.subr.bf16.mxu0 %v290
    %354 = vmatpush1.bf16.msra.mxu0 %v289
    %355 = vmatprep.subr.bf16.mxu0 %v292
    %356 = vmatpush1.bf16.msra.mxu0 %v291
    %357 = vmatprep.subr.bf16.mxu0 %v294
    %358 = vmatpush1.bf16.msra.mxu0 %v293
    %359 = vmatprep.subr.bf16.mxu0 %v296
    %360 = vmatpush1.bf16.msra.mxu0 %v295
    %361 = vmatprep.subr.bf16.mxu0 %v298
    %362 = vmatpush1.bf16.msra.mxu0 %v297
    %363 = vmatprep.subr.bf16.mxu0 %v300
    %364 = vmatpush1.bf16.msra.mxu0 %v299
    %365 = vmatprep.subr.bf16.mxu0 %v302
    %366 = vmatpush1.bf16.msra.mxu0 %v301
    %367 = vmatprep.subr.bf16.mxu0 %v304
    %368 = vmatpush1.bf16.msra.mxu0 %v303
    %369 = vmatprep.subr.bf16.mxu0 %v306
    %370 = vmatpush1.bf16.msra.mxu0 %v305
    %371 = vmatprep.subr.bf16.mxu0 %v308
    %372 = vmatpush1.bf16.msra.mxu0 %v307
    %373 = vmatprep.subr.bf16.mxu0 %v310
    %374 = vmatpush1.bf16.msra.mxu0 %v309
    %375 = vmatprep.mubr.bf16.mxu0 %v138
    %376 = vmatmul.mubr.bf16.gmra.mrb[0].mxu0 %v137
    %v377 = vpop.f32.mrb[0].mxu0
    %v378 = vadd.f32 %v176, %v377
    %v379 = vpop.f32.mrb[0].mxu0
    %v380 = vadd.f32 %v180, %v379
    %v381 = vpop.f32.mrb[0].mxu0
    %v382 = vpop.f32.mrb[0].mxu0
    %383 = vdwg.mxu0
    %v384 = vmax.f32 %v378, 0.0
    %v385 = vmax.f32 %v380, 0.0
    %v386 = vld [vmem:[%s6] sm:$0x3]
    %v388 = vlaneseq
    %v389 = vshrl.u32 %v388, 7
    %v390 = vsub.s32 0, %v389
    %v391 = vrot.slane %v386, %v390
    %v392 = vlaneseq
    %v393 = vshrl.u32 %v392, 7
    %v394 = vsub.s32 1, %v393
    %v395 = vrot.slane %v386, %v394
    %v398 = vmul.f32 %v384, %v391
    %v399 = vmul.f32 %v385, %v395
    %v400 = vadd.f32 %v398, %v399
    %401 = vadd.xlane.f32.xlu0 %v400
    %v402 = vpop.xlane.xlu0 %401
    %s403 = sld [smem:[#allocation2]]
    %v404 = vstv %s403
    %v405 = vadd.f32 %v402, %v404
    %vm406 = vcmask 7168
    %407 = vst.msk [vmem:[%s8] sm:$0xff] %vm406, %v405
    // Predicated region
    $region42: #{tpu_custom_call.1} parent=1 // pred_check
      _
    $region43: #{tpu_custom_call.1} parent=1 // pred_check_branch
      %409 = sbr.rel (0) target = $region45
    $region44: #{tpu_custom_call.1} parent=1 // pred_region
      _
    $region45: #{tpu_custom_call.1} parent=1 // pred_fallthru
      _
    // Predicated region
    $region46: #{tpu_custom_call.1} parent=1 // pred_check
      _
    $region47: #{tpu_custom_call.1} parent=1 // pred_check_branch
      %411 = sbr.rel (0) target = $region49
    $region48: #{tpu_custom_call.1} parent=1 // pred_region
      _
    $region49: #{tpu_custom_call.1} parent=1 // pred_fallthru
      _
    %412 = vsyncpa [#allocation4], 1
    %413 = vsyncpa [#allocation6], 1

</llo_original>
